<compile_context>
chip_gen: v7x
topology: tpu7x:2x2x1
jax: 0.10.0
libtpu: 0.0.40
codegen_flags: <defaults>
</compile_context>

<pallas_src>
import jax
import jax.numpy as jnp
import numpy as np
from jax.experimental import pallas as pl
from jax.experimental.pallas import tpu as pltpu


# ----------------------------- kernel ----------------------------------------


def se_block_kernel(x_ref, y_ref, w1b_ref, w2b_ref, o_ref):
    """Fused SE block, single grid step.

    x_ref, y_ref, o_ref : (B*C, HW)       activations, spatial flattened on lanes
    w1b_ref             : (B*C2, B*C)     kron(I_B, fc1_w), bf16
    w2b_ref             : (B*C, B*C2)     kron(I_B, fc2_w), bf16
    """
    _, HW = x_ref.shape
    inv_hw = 1.0 / HW

    # Global average pool on the MXU: multiplying by a ones(HW, 128) matrix
    # produces the per-(b, c) pooled mean already replicated across 128 lanes,
    # so no XLU cross-lane reduce / broadcast sits on the gate's critical chain.
    ones = jnp.ones((HW, 128), dtype=jnp.bfloat16)
    pooled = jnp.dot(x_ref[...].astype(jnp.bfloat16), ones,
                     preferred_element_type=jnp.float32) * inv_hw       # (B*C, 128)

    # fc1 -> ReLU -> fc2 -> Sigmoid, batched over B via block-diagonal weights.
    # bf16 operands, f32 accumulation: single MXU pass per matmul.
    h = jnp.dot(w1b_ref[...], pooled.astype(jnp.bfloat16),
                preferred_element_type=jnp.float32)                     # (B*C2, 128)
    h = jnp.maximum(h, 0.0)
    z = jnp.dot(w2b_ref[...], h.astype(jnp.bfloat16),
                preferred_element_type=jnp.float32)                     # (B*C, 128)
    scale = jax.nn.sigmoid(z)[:, 0:1]                                   # (B*C, 1)

    # Channel-wise rescale of y: per-sublane scalar broadcast along the lanes.
    o_ref[...] = (y_ref[...] * scale).astype(o_ref.dtype)


# ----------------------------- wrapper ----------------------------------------


def se_block_forward(x_nchw, y_nchw, fc1_w, fc2_w):
    """Pallas SEBlock.  x, y: (B, C, H, W) NCHW.  fc weights in PyTorch (out, in)."""
    B, C, H, W = x_nchw.shape
    HW = H * W
    C2 = fc1_w.shape[0]
    BC = B * C

    # Free, contiguous reshape: NCHW -> (B*C, H*W); spatial becomes the lane dim.
    x2 = x_nchw.reshape(BC, HW)
    y2 = y_nchw.reshape(BC, HW)

    # Block-diagonal weights kron(I_B, W) let both FC layers run batched over B
    # as plain 2-D matmuls in the same (b*C + c)-on-sublanes frame as the pool.
    eye = jnp.eye(B, dtype=fc1_w.dtype)
    w1b = jnp.kron(eye, fc1_w).astype(jnp.bfloat16)                     # (B*C2, B*C)
    w2b = jnp.kron(eye, fc2_w).astype(jnp.bfloat16)                     # (B*C, B*C2)

    out = pl.pallas_call(
        se_block_kernel,
        out_shape=jax.ShapeDtypeStruct((BC, HW), y_nchw.dtype),
        grid=(1,),                                        # single step: whole problem fits VMEM
        in_specs=[
            pl.BlockSpec((BC, HW), lambda i: (0, 0)),     # x
            pl.BlockSpec((BC, HW), lambda i: (0, 0)),     # y
            pl.BlockSpec((B * C2, BC), lambda i: (0, 0)),  # kron(I_B, fc1_w)
            pl.BlockSpec((BC, B * C2), lambda i: (0, 0)),  # kron(I_B, fc2_w)
        ],
        out_specs=pl.BlockSpec((BC, HW), lambda i: (0, 0)),
        compiler_params=pltpu.CompilerParams(
            dimension_semantics=("arbitrary",)),
    )(x2, y2, w1b, w2b)

    return out.reshape(B, C, H, W)


# ------------------------ pure-JAX reference ----------------------------------


def reference_forward(x, y, fc1_w, fc2_w):
    """Mirrors the PyTorch SEBlock in plain JAX (NCHW, f32)."""
    pooled = jnp.mean(x, axis=(2, 3))                        # (B, C)
    h = jax.nn.relu(pooled @ fc1_w.T)                        # (B, C//r)
    s = jax.nn.sigmoid(h @ fc2_w.T)                          # (B, C)
    return y * s[:, :, None, None]


# --------------------------------- main ---------------------------------------


if __name__ == "__main__":
    key = jax.random.PRNGKey(0)
    kx, ky, k1, k2 = jax.random.split(key, 4)

    B, C, H, W = 2, 64, 16, 16          # ch_in = 64 is fixed by the module
    reduction = 2
    C2 = C // reduction

    x = jax.random.normal(kx, (B, C, H, W), jnp.float32)
    y = jax.random.normal(ky, (B, C, H, W), jnp.float32)
    fc1_w = 0.1 * jax.random.normal(k1, (C2, C), jnp.float32)   # PyTorch (out, in)
    fc2_w = 0.1 * jax.random.normal(k2, (C, C2), jnp.float32)   # PyTorch (out, in)

    fwd = jax.jit(se_block_forward)
    out = jax.block_until_ready(fwd(x, y, fc1_w, fc2_w))
    ref = jax.block_until_ready(reference_forward(x, y, fc1_w, fc2_w))

    assert out.shape == (B, C, H, W), out.shape
    max_err = float(jnp.max(jnp.abs(out - ref)))
    ref_scale = float(jnp.max(jnp.abs(ref))) + 1e-6
    assert np.isfinite(max_err), "non-finite output"
    # bf16 MXU operands (f32 accumulation) -> allow a slightly looser tolerance.
    assert max_err / ref_scale < 5e-3, f"mismatch: max_err={max_err}, scale={ref_scale}"

    print("KERNEL_OK")
</pallas_src>

<mosaic_0001>
module attributes {stable_mosaic.version = 11 : i64} {
  func.func @se_block_kernel(%arg0: i32, %arg1: memref<128x256xf32, #tpu.memory_space<vmem>>, %arg2: memref<128x256xf32, #tpu.memory_space<vmem>>, %arg3: memref<64x128xbf16, #tpu.memory_space<vmem>>, %arg4: memref<128x64xbf16, #tpu.memory_space<vmem>>, %arg5: memref<128x256xf32, #tpu.memory_space<vmem>>) attributes {dimension_semantics = [#tpu.dimension_semantics<arbitrary>], iteration_bounds = array<i64: 1>, scalar_prefetch = 0 : i64, scratch_operands = 0 : i64, tpu.core_type = #tpu.core_type<tc>, window_params = [{pipeline_mode = #tpu.pipeline_mode<synchronous>, transform_indices = @transform_0, window_bounds = array<i64: 128, 256>}, {pipeline_mode = #tpu.pipeline_mode<synchronous>, transform_indices = @transform_1, window_bounds = array<i64: 128, 256>}, {pipeline_mode = #tpu.pipeline_mode<synchronous>, transform_indices = @transform_2, window_bounds = array<i64: 64, 128>}, {pipeline_mode = #tpu.pipeline_mode<synchronous>, transform_indices = @transform_3, window_bounds = array<i64: 128, 64>}, {pipeline_mode = #tpu.pipeline_mode<synchronous>, transform_indices = @transform_4, window_bounds = array<i64: 128, 256>}]} {
    %cst = arith.constant 1.000000e+00 : bf16
    %0 = vector.broadcast %cst : bf16 to vector<256x128xbf16>
    %c0 = arith.constant 0 : index
    %c0_0 = arith.constant 0 : index
    %1 = vector.load %arg1[%c0, %c0_0] : memref<128x256xf32, #tpu.memory_space<vmem>>, vector<128x256xf32>
    %2 = arith.truncf %1 : vector<128x256xf32> to vector<128x256xbf16>
    %cst_1 = arith.constant dense<0.000000e+00> : vector<128x128xf32>
    %3 = tpu.matmul %2, %0, %cst_1 {dimension_numbers = #tpu.dot_dimension_numbers<[1], [0], [0], [1], [0, 0, 1, 1], [], []>} : vector<128x256xbf16>, vector<256x128xbf16>, vector<128x128xf32> -> vector<128x128xf32>
    %cst_2 = arith.constant 3.906250e-03 : f32
    %4 = vector.broadcast %cst_2 : f32 to vector<128x128xf32>
    %5 = arith.mulf %3, %4 : vector<128x128xf32>
    %c0_3 = arith.constant 0 : index
    %c0_4 = arith.constant 0 : index
    %6 = vector.load %arg3[%c0_3, %c0_4] : memref<64x128xbf16, #tpu.memory_space<vmem>>, vector<64x128xbf16>
    %7 = arith.truncf %5 : vector<128x128xf32> to vector<128x128xbf16>
    %cst_5 = arith.constant dense<0.000000e+00> : vector<64x128xf32>
    %8 = tpu.matmul %6, %7, %cst_5 {dimension_numbers = #tpu.dot_dimension_numbers<[1], [0], [0], [1], [0, 0, 1, 1], [], []>} : vector<64x128xbf16>, vector<128x128xbf16>, vector<64x128xf32> -> vector<64x128xf32>
    %cst_6 = arith.constant 0.000000e+00 : f32
    %9 = vector.broadcast %cst_6 : f32 to vector<64x128xf32>
    %10 = arith.maximumf %8, %9 : vector<64x128xf32>
    %c0_7 = arith.constant 0 : index
    %c0_8 = arith.constant 0 : index
    %11 = vector.load %arg4[%c0_7, %c0_8] : memref<128x64xbf16, #tpu.memory_space<vmem>>, vector<128x64xbf16>
    %12 = arith.truncf %10 : vector<64x128xf32> to vector<64x128xbf16>
    %cst_9 = arith.constant dense<0.000000e+00> : vector<128x128xf32>
    %13 = tpu.matmul %11, %12, %cst_9 {dimension_numbers = #tpu.dot_dimension_numbers<[1], [0], [0], [1], [0, 0, 1, 1], [], []>} : vector<128x64xbf16>, vector<64x128xbf16>, vector<128x128xf32> -> vector<128x128xf32>
    %14 = arith.negf %13 : vector<128x128xf32>
    %15 = math.exp %14 : vector<128x128xf32>
    %cst_10 = arith.constant 1.000000e+00 : f32
    %16 = vector.broadcast %cst_10 : f32 to vector<128x128xf32>
    %17 = arith.addf %16, %15 : vector<128x128xf32>
    %18 = arith.divf %16, %17 : vector<128x128xf32>
    %19 = vector.extract_strided_slice %18 {offsets = [0, 0], sizes = [128, 1], strides = [1, 1]} : vector<128x128xf32> to vector<128x1xf32>
    %c0_11 = arith.constant 0 : index
    %c0_12 = arith.constant 0 : index
    %20 = vector.load %arg2[%c0_11, %c0_12] : memref<128x256xf32, #tpu.memory_space<vmem>>, vector<128x256xf32>
    %21 = vector.broadcast %19 : vector<128x1xf32> to vector<128x256xf32>
    %22 = arith.mulf %20, %21 : vector<128x256xf32>
    %c0_13 = arith.constant 0 : index
    %c0_14 = arith.constant 0 : index
    %23 = vector.load %arg5[%c0_13, %c0_14] : memref<128x256xf32, #tpu.memory_space<vmem>>, vector<128x256xf32>
    tpu.vector_store %arg5[%c0_13, %c0_14], %22 {strides = array<i32>} : memref<128x256xf32, #tpu.memory_space<vmem>>, vector<128x256xf32>,
    return
  }
  func.func @transform_0(%arg0: i32) -> (i32, i32) {
    %c0_i32 = arith.constant 0 : i32
    %c0_i32_0 = arith.constant 0 : i32
    %c0_i32_1 = arith.constant 0 : i32
    return %c0_i32, %c0_i32_0 : i32, i32
  }
  func.func @transform_1(%arg0: i32) -> (i32, i32) {
    %c0_i32 = arith.constant 0 : i32
    %c0_i32_0 = arith.constant 0 : i32
    %c0_i32_1 = arith.constant 0 : i32
    return %c0_i32, %c0_i32_0 : i32, i32
  }
  func.func @transform_2(%arg0: i32) -> (i32, i32) {
    %c0_i32 = arith.constant 0 : i32
    %c0_i32_0 = arith.constant 0 : i32
    %c0_i32_1 = arith.constant 0 : i32
    return %c0_i32, %c0_i32_0 : i32, i32
  }
  func.func @transform_3(%arg0: i32) -> (i32, i32) {
    %c0_i32 = arith.constant 0 : i32
    %c0_i32_0 = arith.constant 0 : i32
    %c0_i32_1 = arith.constant 0 : i32
    return %c0_i32, %c0_i32_0 : i32, i32
  }
  func.func @transform_4(%arg0: i32) -> (i32, i32) {
    %c0_i32 = arith.constant 0 : i32
    %c0_i32_0 = arith.constant 0 : i32
    %c0_i32_1 = arith.constant 0 : i32
    return %c0_i32, %c0_i32_0 : i32, i32
  }
}

</mosaic_0001>

<llo_original>
// kernel: se_block_forward.1
$region0: #{se_block_forward.1}
  #allocation0 [shape = 'u32[]', space=smem, size = 0x4, offset = 0x4, fixed_abs, tag = 'smem constant byte address 0x4 - core index']
  #allocation1 [shape = 'u32[144,128]{1,0:T(1,128)}', space=vmem, size = 0x12000, scoped, tag = 'internal scratch']
  %s0 = inlined_call_operand.vmem [shape: f32[128,256], index: 0, kind: input, shape index: {}]
  %s1 = inlined_call_operand.vmem [shape: f32[128,256], index: 1, kind: input, shape index: {}]
  %s2 = inlined_call_operand.vmem [shape: bf16[64,128], index: 2, kind: input, shape index: {}]
  %s3 = inlined_call_operand.vmem [shape: bf16[128,64], index: 3, kind: input, shape index: {}]
  %s4 = inlined_call_operand.vmem [shape: f32[128,256], index: 4, kind: output, shape index: {}]
  %s5 = sld [smem:[#allocation0]]
  $region26: #{se_block_forward.1} parent=0
    _
  %s7 = ssub.s32 1, %s5
  %s8 = scalar_select 0, %s7, %s5
  // Predicated region
  $region2: #{se_block_forward.1} parent=0 // pred_check
    _
  $region3: #{se_block_forward.1} parent=0 // pred_check_branch
    %10 = sbr.rel (0) target = $region5
  $region4: #{se_block_forward.1} parent=0 // pred_region
    _
  $region5: #{se_block_forward.1} parent=0 // pred_fallthru
    _
  // Predicated region
  $region6: #{se_block_forward.1} parent=0 // pred_check
    _
  $region7: #{se_block_forward.1} parent=0 // pred_check_branch
    %12 = sbr.rel (0) target = $region9
  $region8: #{se_block_forward.1} parent=0 // pred_region
    _
  $region9: #{se_block_forward.1} parent=0 // pred_fallthru
    _
  // Predicated region
  $region10: #{se_block_forward.1} parent=0 // pred_check
    _
  $region11: #{se_block_forward.1} parent=0 // pred_check_branch
    %14 = sbr.rel (0) target = $region13
  $region12: #{se_block_forward.1} parent=0 // pred_region
    _
  $region13: #{se_block_forward.1} parent=0 // pred_fallthru
    _
  // Predicated region
  $region14: #{se_block_forward.1} parent=0 // pred_check
    _
  $region15: #{se_block_forward.1} parent=0 // pred_check_branch
    %16 = sbr.rel (0) target = $region17
  $region16: #{se_block_forward.1} parent=0 // pred_region
    _
  $region17: #{se_block_forward.1} parent=0 // pred_fallthru
    _
  %v19 = vld [vmem:[%s0] sm:$0xff]
  %v20 = vld [vmem:[%s0 + $0x8] sm:$0xff]
  %v21 = vld [vmem:[%s0 + $0x10] sm:$0xff]
  %v22 = vld [vmem:[%s0 + $0x18] sm:$0xff]
  %v23 = vld [vmem:[%s0 + $0x20] sm:$0xff]
  %v24 = vld [vmem:[%s0 + $0x28] sm:$0xff]
  %v25 = vld [vmem:[%s0 + $0x30] sm:$0xff]
  %v26 = vld [vmem:[%s0 + $0x38] sm:$0xff]
  %v27 = vld [vmem:[%s0 + $0x40] sm:$0xff]
  %v28 = vld [vmem:[%s0 + $0x48] sm:$0xff]
  %v29 = vld [vmem:[%s0 + $0x50] sm:$0xff]
  %v30 = vld [vmem:[%s0 + $0x58] sm:$0xff]
  %v31 = vld [vmem:[%s0 + $0x60] sm:$0xff]
  %v32 = vld [vmem:[%s0 + $0x68] sm:$0xff]
  %v33 = vld [vmem:[%s0 + $0x70] sm:$0xff]
  %v34 = vld [vmem:[%s0 + $0x78] sm:$0xff]
  %v35 = vld [vmem:[%s0 + $0x80] sm:$0xff]
  %v36 = vld [vmem:[%s0 + $0x88] sm:$0xff]
  %v37 = vld [vmem:[%s0 + $0x90] sm:$0xff]
  %v38 = vld [vmem:[%s0 + $0x98] sm:$0xff]
  %v39 = vld [vmem:[%s0 + $0xa0] sm:$0xff]
  %v40 = vld [vmem:[%s0 + $0xa8] sm:$0xff]
  %v41 = vld [vmem:[%s0 + $0xb0] sm:$0xff]
  %v42 = vld [vmem:[%s0 + $0xb8] sm:$0xff]
  %v43 = vld [vmem:[%s0 + $0xc0] sm:$0xff]
  %v44 = vld [vmem:[%s0 + $0xc8] sm:$0xff]
  %v45 = vld [vmem:[%s0 + $0xd0] sm:$0xff]
  %v46 = vld [vmem:[%s0 + $0xd8] sm:$0xff]
  %v47 = vld [vmem:[%s0 + $0xe0] sm:$0xff]
  %v48 = vld [vmem:[%s0 + $0xe8] sm:$0xff]
  %v49 = vld [vmem:[%s0 + $0xf0] sm:$0xff]
  %v50 = vld [vmem:[%s0 + $0xf8] sm:$0xff]
  %v51 = vpack.c.bf16 %v21, %v19
  %v52 = vpack.c.bf16 %v22, %v20
  %v53 = vpack.c.bf16 %v25, %v23
  %v54 = vpack.c.bf16 %v26, %v24
  %v55 = vpack.c.bf16 %v29, %v27
  %v56 = vpack.c.bf16 %v30, %v28
  %v57 = vpack.c.bf16 %v33, %v31
  %v58 = vpack.c.bf16 %v34, %v32
  %v59 = vpack.c.bf16 %v37, %v35
  %v60 = vpack.c.bf16 %v38, %v36
  %v61 = vpack.c.bf16 %v41, %v39
  %v62 = vpack.c.bf16 %v42, %v40
  %v63 = vpack.c.bf16 %v45, %v43
  %v64 = vpack.c.bf16 %v46, %v44
  %v65 = vpack.c.bf16 %v49, %v47
  %v66 = vpack.c.bf16 %v50, %v48
  %67 = vmatprep.subr.bf16.mxu0 0
  %68 = vmatpush1.bf16.msra.mxu0 1065369472
  %69 = vmatprep.subr.bf16.mxu0 0
  %70 = vmatpush1.bf16.msra.mxu0 1065369472
  %71 = vmatprep.subr.bf16.mxu0 0
  %72 = vmatpush1.bf16.msra.mxu0 1065369472
  %73 = vmatprep.subr.bf16.mxu0 0
  %74 = vmatpush1.bf16.msra.mxu0 1065369472
  %75 = vmatprep.subr.bf16.mxu0 0
  %76 = vmatpush1.bf16.msra.mxu0 1065369472
  %77 = vmatprep.subr.bf16.mxu0 0
  %78 = vmatpush1.bf16.msra.mxu0 1065369472
  %79 = vmatprep.subr.bf16.mxu0 0
  %80 = vmatpush1.bf16.msra.mxu0 1065369472
  %81 = vmatprep.subr.bf16.mxu0 0
  %82 = vmatpush1.bf16.msra.mxu0 1065369472
  %83 = vmatprep.subr.bf16.mxu0 0
  %84 = vmatpush1.bf16.msra.mxu0 1065369472
  %85 = vmatprep.subr.bf16.mxu0 0
  %86 = vmatpush1.bf16.msra.mxu0 1065369472
  %87 = vmatprep.subr.bf16.mxu0 0
  %88 = vmatpush1.bf16.msra.mxu0 1065369472
  %89 = vmatprep.subr.bf16.mxu0 0
  %90 = vmatpush1.bf16.msra.mxu0 1065369472
  %91 = vmatprep.subr.bf16.mxu0 0
  %92 = vmatpush1.bf16.msra.mxu0 1065369472
  %93 = vmatprep.subr.bf16.mxu0 0
  %94 = vmatpush1.bf16.msra.mxu0 1065369472
  %95 = vmatprep.subr.bf16.mxu0 0
  %96 = vmatpush1.bf16.msra.mxu0 1065369472
  %97 = vmatprep.subr.bf16.mxu0 0
  %98 = vmatpush1.bf16.msra.mxu0 1065369472
  %99 = vmatprep.mubr.bf16.mxu0 %v52
  %100 = vmatmul.mubr.bf16.gmra.mrb[0].mxu0 %v51
  %v101 = vpop.f32.mrb[0].mxu0
  %v102 = vadd.f32 0.0, %v101
  %v103 = vpop.f32.mrb[0].mxu0
  %v104 = vpop.f32.mrb[0].mxu0
  %v105 = vadd.f32 0.0, %v104
  %v106 = vpop.f32.mrb[0].mxu0
  %107 = vmatprep.mubr.bf16.mxu0 %v54
  %108 = vmatmul.mubr.bf16.gmra.mrb[0].mxu0 %v53
  %v109 = vpop.f32.mrb[0].mxu0
  %v110 = vadd.f32 0.0, %v109
  %v111 = vpop.f32.mrb[0].mxu0
  %v112 = vpop.f32.mrb[0].mxu0
  %v113 = vadd.f32 0.0, %v112
  %v114 = vpop.f32.mrb[0].mxu0
  %115 = vmatprep.mubr.bf16.mxu0 %v56
  %116 = vmatmul.mubr.bf16.gmra.mrb[0].mxu0 %v55
  %v117 = vpop.f32.mrb[0].mxu0
  %v118 = vadd.f32 0.0, %v117
  %v119 = vpop.f32.mrb[0].mxu0
  %v120 = vpop.f32.mrb[0].mxu0
  %v121 = vadd.f32 0.0, %v120
  %v122 = vpop.f32.mrb[0].mxu0
  %123 = vmatprep.mubr.bf16.mxu0 %v58
  %124 = vmatmul.mubr.bf16.gmra.mrb[0].mxu0 %v57
  %v125 = vpop.f32.mrb[0].mxu0
  %v126 = vadd.f32 0.0, %v125
  %v127 = vpop.f32.mrb[0].mxu0
  %v128 = vpop.f32.mrb[0].mxu0
  %v129 = vadd.f32 0.0, %v128
  %v130 = vpop.f32.mrb[0].mxu0
  %131 = vmatprep.mubr.bf16.mxu0 %v60
  %132 = vmatmul.mubr.bf16.gmra.mrb[0].mxu0 %v59
  %v133 = vpop.f32.mrb[0].mxu0
  %v134 = vadd.f32 0.0, %v133
  %v135 = vpop.f32.mrb[0].mxu0
  %v136 = vpop.f32.mrb[0].mxu0
  %v137 = vadd.f32 0.0, %v136
  %v138 = vpop.f32.mrb[0].mxu0
  %139 = vmatprep.mubr.bf16.mxu0 %v62
  %140 = vmatmul.mubr.bf16.gmra.mrb[0].mxu0 %v61
  %v141 = vpop.f32.mrb[0].mxu0
  %v142 = vadd.f32 0.0, %v141
  %v143 = vpop.f32.mrb[0].mxu0
  %v144 = vpop.f32.mrb[0].mxu0
  %v145 = vadd.f32 0.0, %v144
  %v146 = vpop.f32.mrb[0].mxu0
  %147 = vmatprep.mubr.bf16.mxu0 %v64
  %148 = vmatmul.mubr.bf16.gmra.mrb[0].mxu0 %v63
  %v149 = vpop.f32.mrb[0].mxu0
  %v150 = vadd.f32 0.0, %v149
  %v151 = vpop.f32.mrb[0].mxu0
  %v152 = vpop.f32.mrb[0].mxu0
  %v153 = vadd.f32 0.0, %v152
  %v154 = vpop.f32.mrb[0].mxu0
  %155 = vmatprep.mubr.bf16.mxu0 %v66
  %156 = vmatmul.mubr.bf16.gmra.mrb[0].mxu0 %v65
  %v157 = vpop.f32.mrb[0].mxu0
  %v158 = vadd.f32 0.0, %v157
  %v159 = vpop.f32.mrb[0].mxu0
  %v160 = vpop.f32.mrb[0].mxu0
  %v161 = vadd.f32 0.0, %v160
  %v162 = vpop.f32.mrb[0].mxu0
  %163 = vdwg.mxu0
  %v164 = vmul.f32 %v102, 0.00390625
  %v165 = vmul.f32 %v105, 0.00390625
  %v166 = vmul.f32 %v110, 0.00390625
  %v167 = vmul.f32 %v113, 0.00390625
  %v168 = vmul.f32 %v118, 0.00390625
  %v169 = vmul.f32 %v121, 0.00390625
  %v170 = vmul.f32 %v126, 0.00390625
  %v171 = vmul.f32 %v129, 0.00390625
  %v172 = vmul.f32 %v134, 0.00390625
  %v173 = vmul.f32 %v137, 0.00390625
  %v174 = vmul.f32 %v142, 0.00390625
  %v175 = vmul.f32 %v145, 0.00390625
  %v176 = vmul.f32 %v150, 0.00390625
  %v177 = vmul.f32 %v153, 0.00390625
  %v178 = vmul.f32 %v158, 0.00390625
  %v179 = vmul.f32 %v161, 0.00390625
  %v180 = vld [vmem:[%s2] sm:$0xf]
  %v181 = vld [vmem:[%s2 + $0x4] sm:$0xf]
  %v182 = vld [vmem:[%s2 + $0x8] sm:$0xf]
  %v183 = vld [vmem:[%s2 + $0xc] sm:$0xf]
  %v184 = vld [vmem:[%s2 + $0x10] sm:$0xf]
  %v185 = vld [vmem:[%s2 + $0x14] sm:$0xf]
  %v186 = vld [vmem:[%s2 + $0x18] sm:$0xf]
  %v187 = vld [vmem:[%s2 + $0x1c] sm:$0xf]
  %v188 = vpack.c.bf16 %v165, %v164
  %v189 = vpack.c.bf16 %v167, %v166
  %v190 = vpack.c.bf16 %v169, %v168
  %v191 = vpack.c.bf16 %v171, %v170
  %v192 = vpack.c.bf16 %v173, %v172
  %v193 = vpack.c.bf16 %v175, %v174
  %v194 = vpack.c.bf16 %v177, %v176
  %v195 = vpack.c.bf16 %v179, %v178
  %v204 = vunpack.c.l.b16 %v180
  %v205 = vunpack.c.l.b16 %v181
  %v206 = vunpack.c.l.b16 %v182
  %v207 = vunpack.c.l.b16 %v183
  %v208 = vunpack.c.l.b16 %v184
  %v209 = vunpack.c.l.b16 %v185
  %v210 = vunpack.c.l.b16 %v186
  %v211 = vunpack.c.l.b16 %v187
  %v212 = vpack.c.b16 %v205, %v204
  %v213 = vpack.c.b16 %v207, %v206
  %v214 = vpack.c.b16 %v209, %v208
  %v215 = vpack.c.b16 %v211, %v210
  %220 = vmatprep.subr.bf16.mxu0 0
  %221 = vmatpush1.bf16.msra.mxu0 %v188
  %222 = vmatprep.subr.bf16.mxu0 0
  %223 = vmatpush1.bf16.msra.mxu0 %v189
  %224 = vmatprep.subr.bf16.mxu0 0
  %225 = vmatpush1.bf16.msra.mxu0 %v190
  %226 = vmatprep.subr.bf16.mxu0 0
  %227 = vmatpush1.bf16.msra.mxu0 %v191
  %228 = vmatprep.subr.bf16.mxu0 0
  %229 = vmatpush1.bf16.msra.mxu0 %v192
  %230 = vmatprep.subr.bf16.mxu0 0
  %231 = vmatpush1.bf16.msra.mxu0 %v193
  %232 = vmatprep.subr.bf16.mxu0 0
  %233 = vmatpush1.bf16.msra.mxu0 %v194
  %234 = vmatprep.subr.bf16.mxu0 0
  %235 = vmatpush1.bf16.msra.mxu0 %v195
  %236 = vmatprep.subr.bf16.mxu0 0
  %237 = vmatpush1.bf16.msra.mxu0 0
  %238 = vmatprep.subr.bf16.mxu0 0
  %239 = vmatpush1.bf16.msra.mxu0 0
  %240 = vmatprep.subr.bf16.mxu0 0
  %241 = vmatpush1.bf16.msra.mxu0 0
  %242 = vmatprep.subr.bf16.mxu0 0
  %243 = vmatpush1.bf16.msra.mxu0 0
  %244 = vmatprep.subr.bf16.mxu0 0
  %245 = vmatpush1.bf16.msra.mxu0 0
  %246 = vmatprep.subr.bf16.mxu0 0
  %247 = vmatpush1.bf16.msra.mxu0 0
  %248 = vmatprep.subr.bf16.mxu0 0
  %249 = vmatpush1.bf16.msra.mxu0 0
  %250 = vmatprep.subr.bf16.mxu0 0
  %251 = vmatpush1.bf16.msra.mxu0 0
  %252 = vmatprep.mubr.bf16.mxu0 0
  %253 = vmatmul.mubr.bf16.gmra.mrb[0].mxu0 %v212
  %v254 = vpop.f32.mrb[0].mxu0
  %v255 = vadd.f32 0.0, %v254
  %v256 = vpop.f32.mrb[0].mxu0
  %v257 = vpop.f32.mrb[0].mxu0
  %v258 = vadd.f32 0.0, %v257
  %v259 = vpop.f32.mrb[0].mxu0
  %260 = vmatprep.mubr.bf16.mxu0 0
  %261 = vmatmul.mubr.bf16.gmra.mrb[0].mxu0 %v213
  %v262 = vpop.f32.mrb[0].mxu0
  %v263 = vadd.f32 0.0, %v262
  %v264 = vpop.f32.mrb[0].mxu0
  %v265 = vpop.f32.mrb[0].mxu0
  %v266 = vadd.f32 0.0, %v265
  %v267 = vpop.f32.mrb[0].mxu0
  %268 = vmatprep.mubr.bf16.mxu0 0
  %269 = vmatmul.mubr.bf16.gmra.mrb[0].mxu0 %v214
  %v270 = vpop.f32.mrb[0].mxu0
  %v271 = vadd.f32 0.0, %v270
  %v272 = vpop.f32.mrb[0].mxu0
  %v273 = vpop.f32.mrb[0].mxu0
  %v274 = vadd.f32 0.0, %v273
  %v275 = vpop.f32.mrb[0].mxu0
  %276 = vmatprep.mubr.bf16.mxu0 0
  %277 = vmatmul.mubr.bf16.gmra.mrb[0].mxu0 %v215
  %v278 = vpop.f32.mrb[0].mxu0
  %v279 = vadd.f32 0.0, %v278
  %v280 = vpop.f32.mrb[0].mxu0
  %v281 = vpop.f32.mrb[0].mxu0
  %v282 = vadd.f32 0.0, %v281
  %v283 = vpop.f32.mrb[0].mxu0
  %284 = vdwg.mxu0
  %v285 = vmax.f32 %v255, 0.0
  %v286 = vmax.f32 %v258, 0.0
  %v287 = vmax.f32 %v263, 0.0
  %v288 = vmax.f32 %v266, 0.0
  %v289 = vmax.f32 %v271, 0.0
  %v290 = vmax.f32 %v274, 0.0
  %v291 = vmax.f32 %v279, 0.0
  %v292 = vmax.f32 %v282, 0.0
  %v293 = vld [vmem:[%s3] sm:$0xf]
  %v294 = vld [vmem:[%s3 + $0x4] sm:$0xf]
  %v295 = vld [vmem:[%s3 + $0x8] sm:$0xf]
  %v296 = vld [vmem:[%s3 + $0xc] sm:$0xf]
  %v297 = vld [vmem:[%s3 + $0x10] sm:$0xf]
  %v298 = vld [vmem:[%s3 + $0x14] sm:$0xf]
  %v299 = vld [vmem:[%s3 + $0x18] sm:$0xf]
  %v300 = vld [vmem:[%s3 + $0x1c] sm:$0xf]
  %v301 = vld [vmem:[%s3 + $0x20] sm:$0xf]
  %v302 = vld [vmem:[%s3 + $0x24] sm:$0xf]
  %v303 = vld [vmem:[%s3 + $0x28] sm:$0xf]
  %v304 = vld [vmem:[%s3 + $0x2c] sm:$0xf]
  %v305 = vld [vmem:[%s3 + $0x30] sm:$0xf]
  %v306 = vld [vmem:[%s3 + $0x34] sm:$0xf]
  %v307 = vld [vmem:[%s3 + $0x38] sm:$0xf]
  %v308 = vld [vmem:[%s3 + $0x3c] sm:$0xf]
  %v309 = vpack.c.bf16 %v286, %v285
  %v310 = vpack.c.bf16 %v288, %v287
  %v311 = vpack.c.bf16 %v290, %v289
  %v312 = vpack.c.bf16 %v292, %v291
  %v329 = vunpack.c.l.b16 %v293
  %v330 = vunpack.c.l.b16 %v294
  %v331 = vunpack.c.l.b16 %v295
  %v332 = vunpack.c.l.b16 %v296
  %v333 = vunpack.c.l.b16 %v297
  %v334 = vunpack.c.l.b16 %v298
  %v335 = vunpack.c.l.b16 %v299
  %v336 = vunpack.c.l.b16 %v300
  %v337 = vunpack.c.l.b16 %v301
  %v338 = vunpack.c.l.b16 %v302
  %v339 = vunpack.c.l.b16 %v303
  %v340 = vunpack.c.l.b16 %v304
  %v341 = vunpack.c.l.b16 %v305
  %v342 = vunpack.c.l.b16 %v306
  %v343 = vunpack.c.l.b16 %v307
  %v344 = vunpack.c.l.b16 %v308
  %v345 = vpack.c.b16 %v330, %v329
  %v346 = vpack.c.b16 %v332, %v331
  %v347 = vpack.c.b16 %v334, %v333
  %v348 = vpack.c.b16 %v336, %v335
  %v349 = vpack.c.b16 %v338, %v337
  %v350 = vpack.c.b16 %v340, %v339
  %v351 = vpack.c.b16 %v342, %v341
  %v352 = vpack.c.b16 %v344, %v343
  %vm353 = vcmask 523264
  %v355 = vsel %vm353, %v345, 0
  %v358 = vsel %vm353, %v346, 0
  %v361 = vsel %vm353, %v347, 0
  %v364 = vsel %vm353, %v348, 0
  %v367 = vsel %vm353, %v349, 0
  %v370 = vsel %vm353, %v350, 0
  %v373 = vsel %vm353, %v351, 0
  %v376 = vsel %vm353, %v352, 0
  %378 = vmatprep.subr.bf16.mxu0 0
  %379 = vmatpush1.bf16.msra.mxu0 %v309
  %380 = vmatprep.subr.bf16.mxu0 0
  %381 = vmatpush1.bf16.msra.mxu0 %v310
  %382 = vmatprep.subr.bf16.mxu0 0
  %383 = vmatpush1.bf16.msra.mxu0 %v311
  %384 = vmatprep.subr.bf16.mxu0 0
  %385 = vmatpush1.bf16.msra.mxu0 %v312
  %386 = vmatprep.subr.bf16.mxu0 0
  %387 = vmatpush1.bf16.msra.mxu0 0
  %388 = vmatprep.subr.bf16.mxu0 0
  %389 = vmatpush1.bf16.msra.mxu0 0
  %390 = vmatprep.subr.bf16.mxu0 0
  %391 = vmatpush1.bf16.msra.mxu0 0
  %392 = vmatprep.subr.bf16.mxu0 0
  %393 = vmatpush1.bf16.msra.mxu0 0
  %394 = vmatprep.subr.bf16.mxu0 0
  %395 = vmatpush1.bf16.msra.mxu0 0
  %396 = vmatprep.subr.bf16.mxu0 0
  %397 = vmatpush1.bf16.msra.mxu0 0
  %398 = vmatprep.subr.bf16.mxu0 0
  %399 = vmatpush1.bf16.msra.mxu0 0
  %400 = vmatprep.subr.bf16.mxu0 0
  %401 = vmatpush1.bf16.msra.mxu0 0
  %402 = vmatprep.subr.bf16.mxu0 0
  %403 = vmatpush1.bf16.msra.mxu0 0
  %404 = vmatprep.subr.bf16.mxu0 0
  %405 = vmatpush1.bf16.msra.mxu0 0
  %406 = vmatprep.subr.bf16.mxu0 0
  %407 = vmatpush1.bf16.msra.mxu0 0
  %408 = vmatprep.subr.bf16.mxu0 0
  %409 = vmatpush1.bf16.msra.mxu0 0
  %410 = vmatprep.mubr.bf16.mxu0 0
  %411 = vmatmul.mubr.bf16.gmra.mrb[0].mxu0 %v355
  %v412 = vpop.f32.mrb[0].mxu0
  %v413 = vadd.f32 0.0, %v412
  %v414 = vpop.f32.mrb[0].mxu0
  %v415 = vpop.f32.mrb[0].mxu0
  %v416 = vadd.f32 0.0, %v415
  %v417 = vpop.f32.mrb[0].mxu0
  %418 = vmatprep.mubr.bf16.mxu0 0
  %419 = vmatmul.mubr.bf16.gmra.mrb[0].mxu0 %v358
  %v420 = vpop.f32.mrb[0].mxu0
  %v421 = vadd.f32 0.0, %v420
  %v422 = vpop.f32.mrb[0].mxu0
  %v423 = vpop.f32.mrb[0].mxu0
  %v424 = vadd.f32 0.0, %v423
  %v425 = vpop.f32.mrb[0].mxu0
  %426 = vmatprep.mubr.bf16.mxu0 0
  %427 = vmatmul.mubr.bf16.gmra.mrb[0].mxu0 %v361
  %v428 = vpop.f32.mrb[0].mxu0
  %v429 = vadd.f32 0.0, %v428
  %v430 = vpop.f32.mrb[0].mxu0
  %v431 = vpop.f32.mrb[0].mxu0
  %v432 = vadd.f32 0.0, %v431
  %v433 = vpop.f32.mrb[0].mxu0
  %434 = vmatprep.mubr.bf16.mxu0 0
  %435 = vmatmul.mubr.bf16.gmra.mrb[0].mxu0 %v364
  %v436 = vpop.f32.mrb[0].mxu0
  %v437 = vadd.f32 0.0, %v436
  %v438 = vpop.f32.mrb[0].mxu0
  %v439 = vpop.f32.mrb[0].mxu0
  %v440 = vadd.f32 0.0, %v439
  %v441 = vpop.f32.mrb[0].mxu0
  %442 = vmatprep.mubr.bf16.mxu0 0
  %443 = vmatmul.mubr.bf16.gmra.mrb[0].mxu0 %v367
  %v444 = vpop.f32.mrb[0].mxu0
  %v445 = vadd.f32 0.0, %v444
  %v446 = vpop.f32.mrb[0].mxu0
  %v447 = vpop.f32.mrb[0].mxu0
  %v448 = vadd.f32 0.0, %v447
  %v449 = vpop.f32.mrb[0].mxu0
  %450 = vmatprep.mubr.bf16.mxu0 0
  %451 = vmatmul.mubr.bf16.gmra.mrb[0].mxu0 %v370
  %v452 = vpop.f32.mrb[0].mxu0
  %v453 = vadd.f32 0.0, %v452
  %v454 = vpop.f32.mrb[0].mxu0
  %v455 = vpop.f32.mrb[0].mxu0
  %v456 = vadd.f32 0.0, %v455
  %v457 = vpop.f32.mrb[0].mxu0
  %458 = vmatprep.mubr.bf16.mxu0 0
  %459 = vmatmul.mubr.bf16.gmra.mrb[0].mxu0 %v373
  %v460 = vpop.f32.mrb[0].mxu0
  %v461 = vadd.f32 0.0, %v460
  %v462 = vpop.f32.mrb[0].mxu0
  %v463 = vpop.f32.mrb[0].mxu0
  %v464 = vadd.f32 0.0, %v463
  %v465 = vpop.f32.mrb[0].mxu0
  %466 = vmatprep.mubr.bf16.mxu0 0
  %467 = vmatmul.mubr.bf16.gmra.mrb[0].mxu0 %v376
  %v468 = vpop.f32.mrb[0].mxu0
  %v469 = vadd.f32 0.0, %v468
  %v470 = vpop.f32.mrb[0].mxu0
  %v471 = vpop.f32.mrb[0].mxu0
  %v472 = vadd.f32 0.0, %v471
  %v473 = vpop.f32.mrb[0].mxu0
  %474 = vdwg.mxu0
  %v475 = vxor.u32 %v413, 2147483648
  %v476 = vxor.u32 %v416, 2147483648
  %v477 = vxor.u32 %v421, 2147483648
  %v478 = vxor.u32 %v424, 2147483648
  %v479 = vxor.u32 %v429, 2147483648
  %v480 = vxor.u32 %v432, 2147483648
  %v481 = vxor.u32 %v437, 2147483648
  %v482 = vxor.u32 %v440, 2147483648
  %v483 = vxor.u32 %v445, 2147483648
  %v484 = vxor.u32 %v448, 2147483648
  %v485 = vxor.u32 %v453, 2147483648
  %v486 = vxor.u32 %v456, 2147483648
  %v487 = vxor.u32 %v461, 2147483648
  %v488 = vxor.u32 %v464, 2147483648
  %v489 = vxor.u32 %v469, 2147483648
  %v490 = vxor.u32 %v472, 2147483648
  %v491 = vmul.f32 %v475, 1.442695
  %v492 = vpow.pop %v491
  %v493 = vmul.f32 %v476, 1.442695
  %v494 = vpow.pop %v493
  %v495 = vmul.f32 %v477, 1.442695
  %v496 = vpow.pop %v495
  %v497 = vmul.f32 %v478, 1.442695
  %v498 = vpow.pop %v497
  %v499 = vmul.f32 %v479, 1.442695
  %v500 = vpow.pop %v499
  %v501 = vmul.f32 %v480, 1.442695
  %v502 = vpow.pop %v501
  %v503 = vmul.f32 %v481, 1.442695
  %v504 = vpow.pop %v503
  %v505 = vmul.f32 %v482, 1.442695
  %v506 = vpow.pop %v505
  %v507 = vmul.f32 %v483, 1.442695
  %v508 = vpow.pop %v507
  %v509 = vmul.f32 %v484, 1.442695
  %v510 = vpow.pop %v509
  %v511 = vmul.f32 %v485, 1.442695
  %v512 = vpow.pop %v511
  %v513 = vmul.f32 %v486, 1.442695
  %v514 = vpow.pop %v513
  %v515 = vmul.f32 %v487, 1.442695
  %v516 = vpow.pop %v515
  %v517 = vmul.f32 %v488, 1.442695
  %v518 = vpow.pop %v517
  %v519 = vmul.f32 %v489, 1.442695
  %v520 = vpow.pop %v519
  %v521 = vmul.f32 %v490, 1.442695
  %v522 = vpow.pop %v521
  %v523 = vadd.f32 %v492, 1.0
  %v524 = vadd.f32 %v494, 1.0
  %v525 = vadd.f32 %v496, 1.0
  %v526 = vadd.f32 %v498, 1.0
  %v527 = vadd.f32 %v500, 1.0
  %v528 = vadd.f32 %v502, 1.0
  %v529 = vadd.f32 %v504, 1.0
  %v530 = vadd.f32 %v506, 1.0
  %v531 = vadd.f32 %v508, 1.0
  %v532 = vadd.f32 %v510, 1.0
  %v533 = vadd.f32 %v512, 1.0
  %v534 = vadd.f32 %v514, 1.0
  %v535 = vadd.f32 %v516, 1.0
  %v536 = vadd.f32 %v518, 1.0
  %v537 = vadd.f32 %v520, 1.0
  %v538 = vadd.f32 %v522, 1.0
  %v539 = vrcp.pop %v523
  %v540 = vmul.f32 1.0, %v539
  %v541 = vrcp.pop %v524
  %v542 = vmul.f32 1.0, %v541
  %v543 = vrcp.pop %v525
  %v544 = vmul.f32 1.0, %v543
  %v545 = vrcp.pop %v526
  %v546 = vmul.f32 1.0, %v545
  %v547 = vrcp.pop %v527
  %v548 = vmul.f32 1.0, %v547
  %v549 = vrcp.pop %v528
  %v550 = vmul.f32 1.0, %v549
  %v551 = vrcp.pop %v529
  %v552 = vmul.f32 1.0, %v551
  %v553 = vrcp.pop %v530
  %v554 = vmul.f32 1.0, %v553
  %v555 = vrcp.pop %v531
  %v556 = vmul.f32 1.0, %v555
  %v557 = vrcp.pop %v532
  %v558 = vmul.f32 1.0, %v557
  %v559 = vrcp.pop %v533
  %v560 = vmul.f32 1.0, %v559
  %v561 = vrcp.pop %v534
  %v562 = vmul.f32 1.0, %v561
  %v563 = vrcp.pop %v535
  %v564 = vmul.f32 1.0, %v563
  %v565 = vrcp.pop %v536
  %v566 = vmul.f32 1.0, %v565
  %v567 = vrcp.pop %v537
  %v568 = vmul.f32 1.0, %v567
  %v569 = vrcp.pop %v538
  %v570 = vmul.f32 1.0, %v569
  %v571 = vld [vmem:[%s1] sm:$0xff]
  %v572 = vld [vmem:[%s1 + $0x8] sm:$0xff]
  %v573 = vld [vmem:[%s1 + $0x10] sm:$0xff]
  %v574 = vld [vmem:[%s1 + $0x18] sm:$0xff]
  %v575 = vld [vmem:[%s1 + $0x20] sm:$0xff]
  %v576 = vld [vmem:[%s1 + $0x28] sm:$0xff]
  %v577 = vld [vmem:[%s1 + $0x30] sm:$0xff]
  %v578 = vld [vmem:[%s1 + $0x38] sm:$0xff]
  %v579 = vld [vmem:[%s1 + $0x40] sm:$0xff]
  %v580 = vld [vmem:[%s1 + $0x48] sm:$0xff]
  %v581 = vld [vmem:[%s1 + $0x50] sm:$0xff]
  %v582 = vld [vmem:[%s1 + $0x58] sm:$0xff]
  %v583 = vld [vmem:[%s1 + $0x60] sm:$0xff]
  %v584 = vld [vmem:[%s1 + $0x68] sm:$0xff]
  %v585 = vld [vmem:[%s1 + $0x70] sm:$0xff]
  %v586 = vld [vmem:[%s1 + $0x78] sm:$0xff]
  %v587 = vld [vmem:[%s1 + $0x80] sm:$0xff]
  %v588 = vld [vmem:[%s1 + $0x88] sm:$0xff]
  %v589 = vld [vmem:[%s1 + $0x90] sm:$0xff]
  %v590 = vld [vmem:[%s1 + $0x98] sm:$0xff]
  %v591 = vld [vmem:[%s1 + $0xa0] sm:$0xff]
  %v592 = vld [vmem:[%s1 + $0xa8] sm:$0xff]
  %v593 = vld [vmem:[%s1 + $0xb0] sm:$0xff]
  %v594 = vld [vmem:[%s1 + $0xb8] sm:$0xff]
  %v595 = vld [vmem:[%s1 + $0xc0] sm:$0xff]
  %v596 = vld [vmem:[%s1 + $0xc8] sm:$0xff]
  %v597 = vld [vmem:[%s1 + $0xd0] sm:$0xff]
  %v598 = vld [vmem:[%s1 + $0xd8] sm:$0xff]
  %v599 = vld [vmem:[%s1 + $0xe0] sm:$0xff]
  %v600 = vld [vmem:[%s1 + $0xe8] sm:$0xff]
  %v601 = vld [vmem:[%s1 + $0xf0] sm:$0xff]
  %v602 = vld [vmem:[%s1 + $0xf8] sm:$0xff]
  %604 = vset.pattern.permute.xlu0 0
  %605 = vperm.xlu0 %604, %v540
  %v606 = vpop.permute.xlu0 %605
  %609 = vset.pattern.permute.xlu0 0
  %610 = vperm.xlu0 %609, %v542
  %v611 = vpop.permute.xlu0 %610
  %614 = vset.pattern.permute.xlu0 0
  %615 = vperm.xlu0 %614, %v544
  %v616 = vpop.permute.xlu0 %615
  %619 = vset.pattern.permute.xlu0 0
  %620 = vperm.xlu0 %619, %v546
  %v621 = vpop.permute.xlu0 %620
  %624 = vset.pattern.permute.xlu0 0
  %625 = vperm.xlu0 %624, %v548
  %v626 = vpop.permute.xlu0 %625
  %629 = vset.pattern.permute.xlu0 0
  %630 = vperm.xlu0 %629, %v550
  %v631 = vpop.permute.xlu0 %630
  %634 = vset.pattern.permute.xlu0 0
  %635 = vperm.xlu0 %634, %v552
  %v636 = vpop.permute.xlu0 %635
  %639 = vset.pattern.permute.xlu0 0
  %640 = vperm.xlu0 %639, %v554
  %v641 = vpop.permute.xlu0 %640
  %644 = vset.pattern.permute.xlu0 0
  %645 = vperm.xlu0 %644, %v556
  %v646 = vpop.permute.xlu0 %645
  %649 = vset.pattern.permute.xlu0 0
  %650 = vperm.xlu0 %649, %v558
  %v651 = vpop.permute.xlu0 %650
  %654 = vset.pattern.permute.xlu0 0
  %655 = vperm.xlu0 %654, %v560
  %v656 = vpop.permute.xlu0 %655
  %659 = vset.pattern.permute.xlu0 0
  %660 = vperm.xlu0 %659, %v562
  %v661 = vpop.permute.xlu0 %660
  %664 = vset.pattern.permute.xlu0 0
  %665 = vperm.xlu0 %664, %v564
  %v666 = vpop.permute.xlu0 %665
  %669 = vset.pattern.permute.xlu0 0
  %670 = vperm.xlu0 %669, %v566
  %v671 = vpop.permute.xlu0 %670
  %674 = vset.pattern.permute.xlu0 0
  %675 = vperm.xlu0 %674, %v568
  %v676 = vpop.permute.xlu0 %675
  %679 = vset.pattern.permute.xlu0 0
  %680 = vperm.xlu0 %679, %v570
  %v681 = vpop.permute.xlu0 %680
  %v683 = vmul.f32 %v571, %v606
  %v684 = vmul.f32 %v572, %v606
  %v685 = vmul.f32 %v573, %v611
  %v686 = vmul.f32 %v574, %v611
  %v687 = vmul.f32 %v575, %v616
  %v688 = vmul.f32 %v576, %v616
  %v689 = vmul.f32 %v577, %v621
  %v690 = vmul.f32 %v578, %v621
  %v691 = vmul.f32 %v579, %v626
  %v692 = vmul.f32 %v580, %v626
  %v693 = vmul.f32 %v581, %v631
  %v694 = vmul.f32 %v582, %v631
  %v695 = vmul.f32 %v583, %v636
  %v696 = vmul.f32 %v584, %v636
  %v697 = vmul.f32 %v585, %v641
  %v698 = vmul.f32 %v586, %v641
  %v699 = vmul.f32 %v587, %v646
  %v700 = vmul.f32 %v588, %v646
  %v701 = vmul.f32 %v589, %v651
  %v702 = vmul.f32 %v590, %v651
  %v703 = vmul.f32 %v591, %v656
  %v704 = vmul.f32 %v592, %v656
  %v705 = vmul.f32 %v593, %v661
  %v706 = vmul.f32 %v594, %v661
  %v707 = vmul.f32 %v595, %v666
  %v708 = vmul.f32 %v596, %v666
  %v709 = vmul.f32 %v597, %v671
  %v710 = vmul.f32 %v598, %v671
  %v711 = vmul.f32 %v599, %v676
  %v712 = vmul.f32 %v600, %v676
  %v713 = vmul.f32 %v601, %v681
  %v714 = vmul.f32 %v602, %v681
  %715 = vst [vmem:[%s4] sm:$0xff] %v683
  %716 = vst [vmem:[%s4 + $0x8] sm:$0xff] %v684
  %717 = vst [vmem:[%s4 + $0x10] sm:$0xff] %v685
  %718 = vst [vmem:[%s4 + $0x18] sm:$0xff] %v686
  %719 = vst [vmem:[%s4 + $0x20] sm:$0xff] %v687
  %720 = vst [vmem:[%s4 + $0x28] sm:$0xff] %v688
  %721 = vst [vmem:[%s4 + $0x30] sm:$0xff] %v689
  %722 = vst [vmem:[%s4 + $0x38] sm:$0xff] %v690
  %723 = vst [vmem:[%s4 + $0x40] sm:$0xff] %v691
  %724 = vst [vmem:[%s4 + $0x48] sm:$0xff] %v692
  %725 = vst [vmem:[%s4 + $0x50] sm:$0xff] %v693
  %726 = vst [vmem:[%s4 + $0x58] sm:$0xff] %v694
  %727 = vst [vmem:[%s4 + $0x60] sm:$0xff] %v695
  %728 = vst [vmem:[%s4 + $0x68] sm:$0xff] %v696
  %729 = vst [vmem:[%s4 + $0x70] sm:$0xff] %v697
  %730 = vst [vmem:[%s4 + $0x78] sm:$0xff] %v698
  %731 = vst [vmem:[%s4 + $0x80] sm:$0xff] %v699
  %732 = vst [vmem:[%s4 + $0x88] sm:$0xff] %v700
  %733 = vst [vmem:[%s4 + $0x90] sm:$0xff] %v701
  %734 = vst [vmem:[%s4 + $0x98] sm:$0xff] %v702
  %735 = vst [vmem:[%s4 + $0xa0] sm:$0xff] %v703
  %736 = vst [vmem:[%s4 + $0xa8] sm:$0xff] %v704
  %737 = vst [vmem:[%s4 + $0xb0] sm:$0xff] %v705
  %738 = vst [vmem:[%s4 + $0xb8] sm:$0xff] %v706
  %739 = vst [vmem:[%s4 + $0xc0] sm:$0xff] %v707
  %740 = vst [vmem:[%s4 + $0xc8] sm:$0xff] %v708
  %741 = vst [vmem:[%s4 + $0xd0] sm:$0xff] %v709
  %742 = vst [vmem:[%s4 + $0xd8] sm:$0xff] %v710
  %743 = vst [vmem:[%s4 + $0xe0] sm:$0xff] %v711
  %744 = vst [vmem:[%s4 + $0xe8] sm:$0xff] %v712
  %745 = vst [vmem:[%s4 + $0xf0] sm:$0xff] %v713
  %746 = vst [vmem:[%s4 + $0xf8] sm:$0xff] %v714
  // Predicated region
  $region18: #{se_block_forward.1} parent=0 // pred_check
    _
  $region19: #{se_block_forward.1} parent=0 // pred_check_branch
    %748 = sbr.rel (0) target = $region21
  $region20: #{se_block_forward.1} parent=0 // pred_region
    _
  $region21: #{se_block_forward.1} parent=0 // pred_fallthru
    _
  // Predicated region
  $region22: #{se_block_forward.1} parent=0 // pred_check
    _
  $region23: #{se_block_forward.1} parent=0 // pred_check_branch
    %750 = sbr.rel (0) target = $region25
  $region24: #{se_block_forward.1} parent=0 // pred_region
    _
  $region25: #{se_block_forward.1} parent=0 // pred_fallthru
    _

</llo_original>
